<compile_context>
chip_gen: v5e
topology: v5e:2x2
jax: 0.10.0
libtpu: 0.0.40
codegen_flags: <defaults>
</compile_context>

<pallas_src>
import functools

import jax
import jax.numpy as jnp
from jax.experimental import pallas as pl
from jax.experimental.pallas import tpu as pltpu

_EPS = 1e-5


def _round_up(x, m):
    return ((x + m - 1) // m) * m


def _vmem_capacity_bytes():
    try:
        return int(pltpu.get_tpu_info().vmem_capacity_bytes)
    except Exception:
        return 64 * 1024 * 1024  # conservative fallback (v7x per-core VMEM)


def _vmem_limit_bytes(streamed_block_bytes, cap):
    # double-buffered streamed blocks + headroom for resident vectors / Mosaic scratch
    need = 2 * int(streamed_block_bytes) + (8 << 20)
    return int(max(16 << 20, min(need, (cap * 3) // 4)))


def _pick_tile_b(batch, bytes_per_row, cap):
    """Largest batch tile whose double-buffered working set stays inside ~1/3 of VMEM."""
    limit = max(8, _round_up(batch, 8))
    budget = cap // 3
    for cand in (1024, 512, 256, 128, 64, 32, 16, 8):
        if cand <= limit and 2 * cand * bytes_per_row <= budget:
            return cand
    return 8


# ======================================================================================
# Fast path: whole problem fits in VMEM -> one pass over x.
# ======================================================================================
def _bn_fast_kernel(x_ref, gamma_ref, beta_ref, o_ref, *, eps):
    x = x_ref[...].astype(jnp.float32)
    mean = jnp.mean(x, axis=0, keepdims=True)
    var = jnp.maximum(jnp.mean(x * x, axis=0, keepdims=True) - mean * mean, 0.0)
    inv = jax.lax.rsqrt(var + eps)
    scale = gamma_ref[...].astype(jnp.float32) * inv
    shift = beta_ref[...].astype(jnp.float32) - mean * scale
    o_ref[...] = (x * scale + shift).astype(o_ref.dtype)


def _group_fast_kernel(x_ref, wg_ref, bg_ref, gamma_ref, beta_ref, o_ref, *, eps, skip_weight):
    x = x_ref[...].astype(jnp.float32)
    n = x.shape[0]
    logits = jnp.dot(x, wg_ref[...].astype(jnp.float32),
                     preferred_element_type=jnp.float32) + bg_ref[...].astype(jnp.float32)
    m = jnp.max(logits, axis=-1, keepdims=True)
    e = jnp.exp(logits - m)
    score = e / jnp.sum(e, axis=-1, keepdims=True)                       # (B, G)
    # expanded feature (b, g, h) = score[b,g] * x[b,h]  -> stats are rank-1 contractions
    gsum = jnp.einsum('bg,bh->gh', score, x, preferred_element_type=jnp.float32)
    gsq = jnp.einsum('bg,bh->gh', score * score, x * x, preferred_element_type=jnp.float32)
    mean = gsum / n
    var = jnp.maximum(gsq / n - mean * mean, 0.0)
    inv = jax.lax.rsqrt(var + eps)
    scale = gamma_ref[...].astype(jnp.float32) * inv                     # (G, H)
    shift = beta_ref[...].astype(jnp.float32) - mean * scale             # (G, H)
    # sum_g [ score_bg * x_bh * scale_gh + shift_gh ]
    acc = x * jnp.dot(score, scale, preferred_element_type=jnp.float32) \
        + jnp.sum(shift, axis=0, keepdims=True)
    o_ref[...] = (x + skip_weight * acc).astype(o_ref.dtype)


# ======================================================================================
# Streaming path, batch mode.
# ======================================================================================
def _bn_stats_kernel(x_ref, sum_ref, sq_ref, *, tile_b, batch):
    t = pl.program_id(1)

    @pl.when(t == 0)
    def _():
        sum_ref[...] = jnp.zeros_like(sum_ref)
        sq_ref[...] = jnp.zeros_like(sq_ref)

    row0 = (pl.program_id(0) * pl.num_programs(1) + t) * tile_b
    rows = jax.lax.broadcasted_iota(jnp.int32, x_ref.shape, 0) + row0
    x = jnp.where(rows < batch, x_ref[...].astype(jnp.float32), 0.0)
    sum_ref[0] += jnp.sum(x, axis=0, keepdims=True)
    sq_ref[0] += jnp.sum(x * x, axis=0, keepdims=True)


def _bn_apply_kernel(x_ref, sum_ref, sq_ref, gamma_ref, beta_ref, o_ref, *, n, eps):
    x = x_ref[...].astype(jnp.float32)
    tot = jnp.sum(sum_ref[...], axis=0)        # (1, H): combine per-core partials
    tot2 = jnp.sum(sq_ref[...], axis=0)
    inv_n = 1.0 / n
    mean = tot * inv_n
    var = jnp.maximum(tot2 * inv_n - mean * mean, 0.0)
    inv = jax.lax.rsqrt(var + eps)
    scale = gamma_ref[...].astype(jnp.float32) * inv
    shift = beta_ref[...].astype(jnp.float32) - mean * scale
    o_ref[...] = (x * scale + shift).astype(o_ref.dtype)


# ======================================================================================
# Streaming path, group mode (gate recomputed in both passes; expansion never hits HBM).
# ======================================================================================
def _group_stats_kernel(x_ref, wg_ref, bg_ref, sum_ref, sq_ref, *, tile_b, batch):
    t = pl.program_id(1)

    @pl.when(t == 0)
    def _():
        sum_ref[...] = jnp.zeros_like(sum_ref)
        sq_ref[...] = jnp.zeros_like(sq_ref)

    row0 = (pl.program_id(0) * pl.num_programs(1) + t) * tile_b
    rows = jax.lax.broadcasted_iota(jnp.int32, x_ref.shape, 0) + row0
    x = jnp.where(rows < batch, x_ref[...].astype(jnp.float32), 0.0)

    logits = jnp.dot(x, wg_ref[...].astype(jnp.float32),
                     preferred_element_type=jnp.float32) + bg_ref[...].astype(jnp.float32)
    m = jnp.max(logits, axis=-1, keepdims=True)
    e = jnp.exp(logits - m)
    score = e / jnp.sum(e, axis=-1, keepdims=True)                       # (tile_b, G)
    # masked (padded) rows have x == 0, so they contribute nothing to the sums.
    sum_ref[0] += jnp.einsum('bg,bh->gh', score, x, preferred_element_type=jnp.float32)
    sq_ref[0] += jnp.einsum('bg,bh->gh', score * score, x * x,
                            preferred_element_type=jnp.float32)


def _group_apply_kernel(x_ref, wg_ref, bg_ref, sum_ref, sq_ref, gamma_ref, beta_ref, o_ref,
                        *, n, eps, skip_weight):
    x = x_ref[...].astype(jnp.float32)
    logits = jnp.dot(x, wg_ref[...].astype(jnp.float32),
                     preferred_element_type=jnp.float32) + bg_ref[...].astype(jnp.float32)
    m = jnp.max(logits, axis=-1, keepdims=True)
    e = jnp.exp(logits - m)
    score = e / jnp.sum(e, axis=-1, keepdims=True)                       # (tile_b, G)

    gsum = jnp.sum(sum_ref[...], axis=0)       # (G, H): combine per-core partials
    gsq = jnp.sum(sq_ref[...], axis=0)
    inv_n = 1.0 / n
    mean = gsum * inv_n
    var = jnp.maximum(gsq * inv_n - mean * mean, 0.0)
    inv = jax.lax.rsqrt(var + eps)
    scale = gamma_ref[...].astype(jnp.float32) * inv                     # (G, H)
    shift = beta_ref[...].astype(jnp.float32) - mean * scale             # (G, H)

    acc = x * jnp.dot(score, scale, preferred_element_type=jnp.float32) \
        + jnp.sum(shift, axis=0, keepdims=True)
    o_ref[...] = (x + skip_weight * acc).astype(o_ref.dtype)


# ======================================================================================
# Wrappers
# ======================================================================================
def _bn_fast(x, gamma, beta, eps, cap):
    B, H = x.shape
    itemsize = jnp.dtype(x.dtype).itemsize
    vmem_limit = _vmem_limit_bytes((2 * itemsize + 8 * 4) * B * H, cap)
    return pl.pallas_call(
        functools.partial(_bn_fast_kernel, eps=float(eps)),
        out_shape=jax.ShapeDtypeStruct((B, H), x.dtype),
        grid_spec=pltpu.PrefetchScalarGridSpec(
            num_scalar_prefetch=0,
            grid=(1,),
            in_specs=[pl.BlockSpec((B, H), lambda i: (0, 0)),
                      pl.BlockSpec((1, H), lambda i: (0, 0)),
                      pl.BlockSpec((1, H), lambda i: (0, 0))],
            out_specs=pl.BlockSpec((B, H), lambda i: (0, 0)),
        ),
        compiler_params=pltpu.CompilerParams(
            dimension_semantics=("arbitrary",),
            vmem_limit_bytes=vmem_limit),
    )(x, gamma, beta)


def _group_fast(x, wg, bg, gamma, beta, eps, skip_weight, cap):
    B, H = x.shape
    G = gamma.shape[0]
    itemsize = jnp.dtype(x.dtype).itemsize
    vmem_limit = _vmem_limit_bytes((2 * itemsize + 10 * 4) * B * H, cap)
    return pl.pallas_call(
        functools.partial(_group_fast_kernel, eps=float(eps), skip_weight=float(skip_weight)),
        out_shape=jax.ShapeDtypeStruct((B, H), x.dtype),
        grid_spec=pltpu.PrefetchScalarGridSpec(
            num_scalar_prefetch=0,
            grid=(1,),
            in_specs=[pl.BlockSpec((B, H), lambda i: (0, 0)),
                      pl.BlockSpec((H, G), lambda i: (0, 0)),
                      pl.BlockSpec((1, G), lambda i: (0, 0)),
                      pl.BlockSpec((G, H), lambda i: (0, 0)),
                      pl.BlockSpec((G, H), lambda i: (0, 0))],
            out_specs=pl.BlockSpec((B, H), lambda i: (0, 0)),
        ),
        compiler_params=pltpu.CompilerParams(
            dimension_semantics=("arbitrary",),
            vmem_limit_bytes=vmem_limit),
    )(x, wg, bg, gamma, beta)


def _bn_streaming(x, gamma, beta, eps, cap):
    B, H = x.shape
    itemsize = jnp.dtype(x.dtype).itemsize
    tile_b = _pick_tile_b(B, H * (2 * itemsize + 16), cap)
    n_tiles = pl.cdiv(B, tile_b)
    parts = 2 if n_tiles >= 2 else 1           # shard the reduction across v7x's two TCs
    tiles_per_part = pl.cdiv(n_tiles, parts)
    vmem_limit = _vmem_limit_bytes(2 * tile_b * H * max(itemsize, 4), cap)

    x_stats_spec = pl.BlockSpec(
        (tile_b, H),
        lambda p, t: (jnp.minimum(p * tiles_per_part + t, n_tiles - 1), 0))

    sums, sqs = pl.pallas_call(
        functools.partial(_bn_stats_kernel, tile_b=tile_b, batch=B),
        out_shape=(jax.ShapeDtypeStruct((parts, 1, H), jnp.float32),
                   jax.ShapeDtypeStruct((parts, 1, H), jnp.float32)),
        grid_spec=pltpu.PrefetchScalarGridSpec(
            num_scalar_prefetch=0,
            grid=(parts, tiles_per_part),
            in_specs=[x_stats_spec],
            out_specs=(pl.BlockSpec((1, 1, H), lambda p, t: (p, 0, 0)),
                       pl.BlockSpec((1, 1, H), lambda p, t: (p, 0, 0))),
        ),
        compiler_params=pltpu.CompilerParams(
            dimension_semantics=("parallel", "arbitrary"),
            vmem_limit_bytes=vmem_limit),
    )(x)

    return pl.pallas_call(
        functools.partial(_bn_apply_kernel, n=float(B), eps=float(eps)),
        out_shape=jax.ShapeDtypeStruct((B, H), x.dtype),
        grid_spec=pltpu.PrefetchScalarGridSpec(
            num_scalar_prefetch=0,
            grid=(n_tiles,),
            in_specs=[
                pl.BlockSpec((tile_b, H), lambda i: (i, 0)),
                pl.BlockSpec((parts, 1, H), lambda i: (0, 0, 0)),
                pl.BlockSpec((parts, 1, H), lambda i: (0, 0, 0)),
                pl.BlockSpec((1, H), lambda i: (0, 0)),
                pl.BlockSpec((1, H), lambda i: (0, 0)),
            ],
            out_specs=pl.BlockSpec((tile_b, H), lambda i: (i, 0)),
        ),
        compiler_params=pltpu.CompilerParams(
            dimension_semantics=("parallel",),
            vmem_limit_bytes=vmem_limit),
    )(x, sums, sqs, gamma, beta)


def _group_streaming(x, wg, bg, gamma, beta, eps, skip_weight, cap):
    B, H = x.shape
    G = gamma.shape[0]
    itemsize = jnp.dtype(x.dtype).itemsize
    tile_b = _pick_tile_b(B, H * (2 * itemsize + 24), cap)
    n_tiles = pl.cdiv(B, tile_b)
    parts = 2 if n_tiles >= 2 else 1
    tiles_per_part = pl.cdiv(n_tiles, parts)
    vmem_limit = _vmem_limit_bytes(2 * tile_b * H * max(itemsize, 4), cap)

    x_stats_spec = pl.BlockSpec(
        (tile_b, H),
        lambda p, t: (jnp.minimum(p * tiles_per_part + t, n_tiles - 1), 0))

    sums, sqs = pl.pallas_call(
        functools.partial(_group_stats_kernel, tile_b=tile_b, batch=B),
        out_shape=(jax.ShapeDtypeStruct((parts, G, H), jnp.float32),
                   jax.ShapeDtypeStruct((parts, G, H), jnp.float32)),
        grid_spec=pltpu.PrefetchScalarGridSpec(
            num_scalar_prefetch=0,
            grid=(parts, tiles_per_part),
            in_specs=[x_stats_spec,
                      pl.BlockSpec((H, G), lambda p, t: (0, 0)),
                      pl.BlockSpec((1, G), lambda p, t: (0, 0))],
            out_specs=(pl.BlockSpec((1, G, H), lambda p, t: (p, 0, 0)),
                       pl.BlockSpec((1, G, H), lambda p, t: (p, 0, 0))),
        ),
        compiler_params=pltpu.CompilerParams(
            dimension_semantics=("parallel", "arbitrary"),
            vmem_limit_bytes=vmem_limit),
    )(x, wg, bg)

    return pl.pallas_call(
        functools.partial(_group_apply_kernel, n=float(B), eps=float(eps),
                          skip_weight=float(skip_weight)),
        out_shape=jax.ShapeDtypeStruct((B, H), x.dtype),
        grid_spec=pltpu.PrefetchScalarGridSpec(
            num_scalar_prefetch=0,
            grid=(n_tiles,),
            in_specs=[
                pl.BlockSpec((tile_b, H), lambda i: (i, 0)),
                pl.BlockSpec((H, G), lambda i: (0, 0)),
                pl.BlockSpec((1, G), lambda i: (0, 0)),
                pl.BlockSpec((parts, G, H), lambda i: (0, 0, 0)),
                pl.BlockSpec((parts, G, H), lambda i: (0, 0, 0)),
                pl.BlockSpec((G, H), lambda i: (0, 0)),
                pl.BlockSpec((G, H), lambda i: (0, 0)),
            ],
            out_specs=pl.BlockSpec((tile_b, H), lambda i: (i, 0)),
        ),
        compiler_params=pltpu.CompilerParams(
            dimension_semantics=("parallel",),
            vmem_limit_bytes=vmem_limit),
    )(x, wg, bg, sums, sqs, gamma, beta)


def batch_norm_forward(x, *, type_norm, gamma=None, beta=None,
                       group_w=None, group_b=None,
                       num_groups=2, skip_weight=0.005, eps=_EPS,
                       force_streaming=False):
    """Forward pass of the `batch_norm` module (train-mode batch statistics)."""
    if type_norm == 'None':
        return x
    if type_norm not in ('batch', 'group'):
        raise Exception('the normalization has not been implemented')

    B, H = x.shape
    itemsize = jnp.dtype(x.dtype).itemsize
    cap = _vmem_capacity_bytes()

    if type_norm == 'batch':
        gamma2 = jnp.asarray(gamma, jnp.float32).reshape(1, H)
        beta2 = jnp.asarray(beta, jnp.float32).reshape(1, H)
        fast_ok = (not force_streaming) and ((8 * 4 + 2 * itemsize) * B * H <= cap // 5)
        if fast_ok:
            return _bn_fast(x, gamma2, beta2, eps, cap)
        return _bn_streaming(x, gamma2, beta2, eps, cap)

    # ---------------- group mode ----------------
    G = int(num_groups)
    gamma2 = jnp.asarray(gamma, jnp.float32).reshape(G, H)
    beta2 = jnp.asarray(beta, jnp.float32).reshape(G, H)
    # With G == 1 the gate softmax is identically 1, so a zero gate reproduces the module.
    wg = (jnp.zeros((H, G), jnp.float32) if group_w is None
          else jnp.asarray(group_w, jnp.float32).reshape(H, G))
    bg = (jnp.zeros((1, G), jnp.float32) if group_b is None
          else jnp.asarray(group_b, jnp.float32).reshape(1, G))
    fast_ok = (not force_streaming) and ((10 * 4 + 2 * itemsize) * B * H <= cap // 5)
    if fast_ok:
        return _group_fast(x, wg, bg, gamma2, beta2, eps, skip_weight, cap)
    return _group_streaming(x, wg, bg, gamma2, beta2, eps, skip_weight, cap)


# ======================================================================================
# Self-test
# ======================================================================================
def _ref_batch(x, gamma, beta, eps):
    mean = x.mean(axis=0)
    var = ((x - mean) ** 2).mean(axis=0)       # biased variance (BN train mode)
    return (x - mean) / jnp.sqrt(var + eps) * gamma + beta


def _ref_group(x, gamma, beta, wg, bg, G, skip_weight, eps):
    B, H = x.shape
    score = jax.nn.softmax(x @ wg + bg, axis=1)
    x_exp = jnp.concatenate([score[:, g:g + 1] * x for g in range(G)], axis=1)
    mean = x_exp.mean(axis=0)
    var = ((x_exp - mean) ** 2).mean(axis=0)
    x_bn = (x_exp - mean) / jnp.sqrt(var + eps) * gamma + beta
    x_tmp = x_bn.reshape(B, G, H).sum(axis=1)
    return x + x_tmp * skip_weight


if __name__ == "__main__":
    key = jax.random.PRNGKey(0)
    ks = jax.random.split(key, 12)
    eps = _EPS
    skip_weight = 0.005

    # ----- small shapes (fast single-pass path) -----
    B, H, G = 16, 32, 2
    x = jax.random.normal(ks[0], (B, H), dtype=jnp.float32)
    gamma = 1.0 + 0.1 * jax.random.normal(ks[1], (H,), dtype=jnp.float32)
    beta = 0.1 * jax.random.normal(ks[2], (H,), dtype=jnp.float32)
    out_b = jax.block_until_ready(
        batch_norm_forward(x, type_norm='batch', gamma=gamma, beta=beta, eps=eps))
    ref_b = _ref_batch(x, gamma, beta, eps)
    assert out_b.shape == (B, H)
    assert jnp.allclose(out_b, ref_b, atol=2e-4, rtol=2e-4), \
        float(jnp.max(jnp.abs(out_b - ref_b)))

    group_w = 0.1 * jax.random.normal(ks[3], (H, G), dtype=jnp.float32)
    group_b = 0.1 * jax.random.normal(ks[4], (G,), dtype=jnp.float32)
    gamma_g = 1.0 + 0.1 * jax.random.normal(ks[5], (G * H,), dtype=jnp.float32)
    beta_g = 0.1 * jax.random.normal(ks[6], (G * H,), dtype=jnp.float32)
    out_g = jax.block_until_ready(
        batch_norm_forward(x, type_norm='group', gamma=gamma_g, beta=beta_g,
                           group_w=group_w, group_b=group_b,
                           num_groups=G, skip_weight=skip_weight, eps=eps))
    ref_g = _ref_group(x, gamma_g, beta_g, group_w, group_b, G, skip_weight, eps)
    assert out_g.shape == (B, H)
    assert jnp.allclose(out_g, ref_g, atol=2e-4, rtol=2e-4), \
        float(jnp.max(jnp.abs(out_g - ref_g)))

    out_n = batch_norm_forward(x, type_norm='None')
    assert jnp.allclose(out_n, x)

    # ----- larger shapes, streaming path forced (partial tiles + 2-way stats split) -----
    B2, H2, G2 = 2200, 96, 3
    x2 = jax.random.normal(ks[7], (B2, H2), dtype=jnp.float32)
    gamma2 = 1.0 + 0.1 * jax.random.normal(ks[8], (H2,), dtype=jnp.float32)
    beta2 = 0.1 * jax.random.normal(ks[9], (H2,), dtype=jnp.float32)
    out_b2 = jax.block_until_ready(
        batch_norm_forward(x2, type_norm='batch', gamma=gamma2, beta=beta2, eps=eps,
                           force_streaming=True))
    ref_b2 = _ref_batch(x2, gamma2, beta2, eps)
    assert jnp.allclose(out_b2, ref_b2, atol=2e-4, rtol=2e-4), \
        float(jnp.max(jnp.abs(out_b2 - ref_b2)))

    group_w2 = 0.1 * jax.random.normal(ks[10], (H2, G2), dtype=jnp.float32)
    group_b2 = 0.1 * jax.random.normal(ks[11], (G2,), dtype=jnp.float32)
    gamma_g2 = 1.0 + 0.1 * jax.random.normal(ks[8], (G2 * H2,), dtype=jnp.float32)
    beta_g2 = 0.1 * jax.random.normal(ks[9], (G2 * H2,), dtype=jnp.float32)
    out_g2 = jax.block_until_ready(
        batch_norm_forward(x2, type_norm='group', gamma=gamma_g2, beta=beta_g2,
                           group_w=group_w2, group_b=group_b2,
                           num_groups=G2, skip_weight=skip_weight, eps=eps,
                           force_streaming=True))
    ref_g2 = _ref_group(x2, gamma_g2, beta_g2, group_w2, group_b2, G2, skip_weight, eps)
    assert jnp.allclose(out_g2, ref_g2, atol=2e-4, rtol=2e-4), \
        float(jnp.max(jnp.abs(out_g2 - ref_g2)))

    print("KERNEL_OK")
</pallas_src>

<mosaic_0001>
module attributes {stable_mosaic.version = 11 : i64} {
  func.func @_bn_fast_kernel(%arg0: i32, %arg1: memref<16x32xf32, #tpu.memory_space<vmem>>, %arg2: memref<1x32xf32, #tpu.memory_space<vmem>>, %arg3: memref<1x32xf32, #tpu.memory_space<vmem>>, %arg4: memref<16x32xf32, #tpu.memory_space<vmem>>) attributes {dimension_semantics = [#tpu.dimension_semantics<arbitrary>], iteration_bounds = array<i64: 1>, scalar_prefetch = 0 : i64, scratch_operands = 0 : i64, tpu.core_type = #tpu.core_type<tc>, window_params = [{pipeline_mode = #tpu.pipeline_mode<synchronous>, transform_indices = @transform_0, window_bounds = array<i64: 16, 32>}, {pipeline_mode = #tpu.pipeline_mode<synchronous>, transform_indices = @transform_1, window_bounds = array<i64: 1, 32>}, {pipeline_mode = #tpu.pipeline_mode<synchronous>, transform_indices = @transform_2, window_bounds = array<i64: 1, 32>}, {pipeline_mode = #tpu.pipeline_mode<synchronous>, transform_indices = @transform_3, window_bounds = array<i64: 16, 32>}]} {
    %c0 = arith.constant 0 : index
    %c0_0 = arith.constant 0 : index
    %0 = vector.load %arg1[%c0, %c0_0] : memref<16x32xf32, #tpu.memory_space<vmem>>, vector<16x32xf32>
    %cst = arith.constant dense<0.000000e+00> : vector<32xf32>
    %1 = vector.multi_reduction <add>, %0, %cst [0] : vector<16x32xf32> to vector<32xf32>
    %2 = vector.shape_cast %1 : vector<32xf32> to vector<1x32xf32>
    %cst_1 = arith.constant 1.600000e+01 : f32
    %3 = vector.broadcast %cst_1 : f32 to vector<1x32xf32>
    %4 = arith.divf %2, %3 : vector<1x32xf32>
    %5 = arith.mulf %0, %0 : vector<16x32xf32>
    %cst_2 = arith.constant dense<0.000000e+00> : vector<32xf32>
    %6 = vector.multi_reduction <add>, %5, %cst_2 [0] : vector<16x32xf32> to vector<32xf32>
    %7 = vector.shape_cast %6 : vector<32xf32> to vector<1x32xf32>
    %cst_3 = arith.constant 1.600000e+01 : f32
    %8 = vector.broadcast %cst_3 : f32 to vector<1x32xf32>
    %9 = arith.divf %7, %8 : vector<1x32xf32>
    %10 = arith.mulf %4, %4 : vector<1x32xf32>
    %11 = arith.subf %9, %10 : vector<1x32xf32>
    %cst_4 = arith.constant 0.000000e+00 : f32
    %12 = vector.broadcast %cst_4 : f32 to vector<1x32xf32>
    %13 = arith.maximumf %11, %12 : vector<1x32xf32>
    %cst_5 = arith.constant 9.99999974E-6 : f32
    %14 = vector.broadcast %cst_5 : f32 to vector<1x32xf32>
    %15 = arith.addf %13, %14 : vector<1x32xf32>
    %16 = math.rsqrt %15 : vector<1x32xf32>
    %c0_6 = arith.constant 0 : index
    %c0_7 = arith.constant 0 : index
    %17 = vector.load %arg2[%c0_6, %c0_7] : memref<1x32xf32, #tpu.memory_space<vmem>>, vector<1x32xf32>
    %18 = arith.mulf %17, %16 : vector<1x32xf32>
    %c0_8 = arith.constant 0 : index
    %c0_9 = arith.constant 0 : index
    %19 = vector.load %arg3[%c0_8, %c0_9] : memref<1x32xf32, #tpu.memory_space<vmem>>, vector<1x32xf32>
    %20 = arith.mulf %4, %18 : vector<1x32xf32>
    %21 = arith.subf %19, %20 : vector<1x32xf32>
    %22 = vector.broadcast %18 : vector<1x32xf32> to vector<16x32xf32>
    %23 = arith.mulf %0, %22 : vector<16x32xf32>
    %24 = vector.broadcast %21 : vector<1x32xf32> to vector<16x32xf32>
    %25 = arith.addf %23, %24 : vector<16x32xf32>
    %c0_10 = arith.constant 0 : index
    %c0_11 = arith.constant 0 : index
    %26 = vector.load %arg4[%c0_10, %c0_11] : memref<16x32xf32, #tpu.memory_space<vmem>>, vector<16x32xf32>
    tpu.vector_store %arg4[%c0_10, %c0_11], %25 {strides = array<i32>} : memref<16x32xf32, #tpu.memory_space<vmem>>, vector<16x32xf32>,
    return
  }
  func.func @transform_0(%arg0: i32) -> (i32, i32) {
    %c0_i32 = arith.constant 0 : i32
    %c0_i32_0 = arith.constant 0 : i32
    %c0_i32_1 = arith.constant 0 : i32
    return %c0_i32, %c0_i32_0 : i32, i32
  }
  func.func @transform_1(%arg0: i32) -> (i32, i32) {
    %c0_i32 = arith.constant 0 : i32
    %c0_i32_0 = arith.constant 0 : i32
    %c0_i32_1 = arith.constant 0 : i32
    return %c0_i32, %c0_i32_0 : i32, i32
  }
  func.func @transform_2(%arg0: i32) -> (i32, i32) {
    %c0_i32 = arith.constant 0 : i32
    %c0_i32_0 = arith.constant 0 : i32
    %c0_i32_1 = arith.constant 0 : i32
    return %c0_i32, %c0_i32_0 : i32, i32
  }
  func.func @transform_3(%arg0: i32) -> (i32, i32) {
    %c0_i32 = arith.constant 0 : i32
    %c0_i32_0 = arith.constant 0 : i32
    %c0_i32_1 = arith.constant 0 : i32
    return %c0_i32, %c0_i32_0 : i32, i32
  }
}

</mosaic_0001>

<llo_original>
// kernel: tpu_custom_call.1
$region0: #{tpu_custom_call.1}
  #allocation0 [shape = 'u32[]', space=smem, size = 0x4, offset = 0x4, fixed_abs, tag = 'smem constant byte address 0x4 - core index']
  #allocation1 [shape = 'u32[72,128]{1,0:T(1,128)}', space=vmem, size = 0x9000, scoped, tag = 'internal scratch']
  %s0 = inlined_call_operand.hbm [shape: f32[16,32], index: 0, kind: input, shape index: {}]
  %s1 = inlined_call_operand.hbm [shape: f32[1,32], index: 1, kind: input, shape index: {}]
  %s2 = inlined_call_operand.vmem [shape: f32[1,32], index: 2, kind: input, shape index: {}]
  %s3 = inlined_call_operand.hbm [shape: f32[16,32], index: 3, kind: output, shape index: {}]
  %s4 = sld [smem:[#allocation0]]
  $region30: #{tpu_custom_call.1} parent=0
    _
  %s6 = ssub.s32 1, %s4
  %s7 = scalar_select 0, %s6, %s4
  $region1: #{tpu_custom_call.1} parent=0
    #allocation2 [shape = 'u8[8192]{0}', space=vmem, size = 0x2000, scoped, tag = 'input window, operand 0, single buffered']
    #allocation3 [shape = 's32[1]{0}', space=sflag, size = 0x4, scoped, tag = 'scoped memory for tpu_custom_call.1']
    #allocation4 [shape = 's32[1]{0}', space=sflag, size = 0x4, scoped, tag = 'scoped memory for tpu_custom_call.1']
    #allocation5 [shape = 'u8[512]{0}', space=vmem, size = 0x400, scoped, tag = 'input window, operand 1, single buffered']
    #allocation6 [shape = 's32[1]{0}', space=sflag, size = 0x4, scoped, tag = 'scoped memory for tpu_custom_call.1']
    #allocation7 [shape = 'u8[8192]{0}', space=vmem, size = 0x2000, scoped, tag = 'output window, operand 0, single buffered']
    %8 = vsyncpa [#allocation3], 0
    %9 = vsyncpa [#allocation6], 0
    %10 = vsyncpa [#allocation4], 0
    // Predicated region
    $region2: #{tpu_custom_call.1} parent=1 // pred_check
      _
    $region3: #{tpu_custom_call.1} parent=1 // pred_check_branch
      %12 = sbr.rel (0) target = $region5
    $region4: #{tpu_custom_call.1} parent=1 // pred_region
      %14 = vsyncadd [#allocation3], 0
      %s15 = sshll.u32 %s0, 4
      %s16 = int_to_ptr.hbm [resolvable:$true] %s15
      %s17 = sshll.u32 [#allocation2], 4
      %s18 = int_to_ptr.vmem [resolvable:$true] %s17
      %23 = dma.hbm_to_vmem [thread:$0]  %s16, 256, %s18, [#allocation3], 128, 128, 8
    $region5: #{tpu_custom_call.1} parent=1 // pred_fallthru
      _
    // Predicated region
    $region6: #{tpu_custom_call.1} parent=1 // pred_check
      _
    $region7: #{tpu_custom_call.1} parent=1 // pred_check_branch
      %25 = sbr.rel (0) target = $region9
    $region8: #{tpu_custom_call.1} parent=1 // pred_region
      %27 = vsyncadd [#allocation6], 0
      %s29 = sshll.u32 %s1, 4
      %s30 = int_to_ptr.hbm [resolvable:$true] %s29
      %s31 = sshll.u32 [#allocation5], 4
      %s32 = int_to_ptr.vmem [resolvable:$true] %s31
      %34 = dma.hbm_to_vmem [thread:$0]  %s30, 16, %s32, [#allocation6]
    $region9: #{tpu_custom_call.1} parent=1 // pred_fallthru
      _
    // Predicated region
    $region10: #{tpu_custom_call.1} parent=1 // pred_check
      _
    $region11: #{tpu_custom_call.1} parent=1 // pred_check_branch
      %36 = sbr.rel (0) target = $region13
    $region12: #{tpu_custom_call.1} parent=1 // pred_region
      _
    $region13: #{tpu_custom_call.1} parent=1 // pred_fallthru
      _
    // Predicated region
    $region14: #{tpu_custom_call.1} parent=1 // pred_check
      _
    $region15: #{tpu_custom_call.1} parent=1 // pred_check_branch
      %38 = sbr.rel (0) target = $region17
    $region16: #{tpu_custom_call.1} parent=1 // pred_region
      %40 = dma.done [#allocation3], 256
    $region17: #{tpu_custom_call.1} parent=1 // pred_fallthru
      _
    // Predicated region
    $region18: #{tpu_custom_call.1} parent=1 // pred_check
      _
    $region19: #{tpu_custom_call.1} parent=1 // pred_check_branch
      %42 = sbr.rel (0) target = $region21
    $region20: #{tpu_custom_call.1} parent=1 // pred_region
      %44 = dma.done [#allocation6], 16
    $region21: #{tpu_custom_call.1} parent=1 // pred_fallthru
      _
    %v45 = vld [vmem:[#allocation2] sm:$0xff]
    %v46 = vld [vmem:[#allocation2 + $0x8] sm:$0xff]
    %vm47 = vcmask 261120
    %v48 = vsel %vm47, %v45, 0.0
    %v49 = vsel %vm47, %v46, 0.0
    %v50 = vadd.f32 %v48, %v49
    %v51 = vrot.slane %v50, 4
    %v52 = vadd.f32 %v50, %v51
    %v53 = vrot.slane %v52, 2
    %v54 = vadd.f32 %v52, %v53
    %v55 = vrot.slane %v54, 1
    %v56 = vadd.f32 %v54, %v55
    %v57 = vrcp.pop 16.0
    %v58 = vmul.f32 16.0, %v57
    %v59 = vsub.f32 1.0, %v58
    %v60 = vmul.f32 %v57, %v59
    %v61 = vadd.f32 %v57, %v60
    %vm62 = vweird.f32 %v57
    %v63 = vsel %vm62, %v57, %v61
    %v64 = vmul.f32 %v56, %v63
    %v65 = vmul.f32 %v45, %v45
    %v66 = vmul.f32 %v46, %v46
    %v67 = vsel %vm47, %v65, 0.0
    %v68 = vsel %vm47, %v66, 0.0
    %v69 = vadd.f32 %v67, %v68
    %v70 = vrot.slane %v69, 4
    %v71 = vadd.f32 %v69, %v70
    %v72 = vrot.slane %v71, 2
    %v73 = vadd.f32 %v71, %v72
    %v74 = vrot.slane %v73, 1
    %v75 = vadd.f32 %v73, %v74
    %v76 = vmul.f32 %v75, %v63
    %v77 = vmul.f32 %v64, %v64
    %v78 = vsub.f32 %v76, %v77
    %v79 = vmax.f32 %v78, 0.0
    %v80 = vadd.f32 %v79, 1e-05
    %v81 = vrsqrt.pop %v80
    %v82 = vmul.f32 %v81, %v80
    %v83 = vmul.f32 %v82, %v81
    %v84 = vmul.f32 0.5, %v83
    %v85 = vsub.f32 1.5, %v84
    %v86 = vmul.f32 %v81, %v85
    %vm87 = vweird.f32 %v80
    %vm88 = vweird.f32 %v81
    %vm89 = vmor %vm87, %vm88
    %v90 = vsel %vm89, %v81, %v86
    %v91 = vld [vmem:[#allocation5] sm:$0x1]
    %v92 = vmul.f32 %v91, %v90
    %v93 = vld [vmem:[%s2] sm:$0x1]
    %v94 = vmul.f32 %v64, %v92
    %v95 = vsub.f32 %v93, %v94
    %v97 = vperm.slane %v92, 0
    %v99 = vmul.f32 %v45, %v97
    %v100 = vmul.f32 %v46, %v97
    %v102 = vperm.slane %v95, 0
    %v104 = vadd.f32 %v99, %v102
    %v105 = vadd.f32 %v100, %v102
    %106 = vst.msk [vmem:[#allocation7] sm:$0xff] %vm47, %v104
    %107 = vst.msk [vmem:[#allocation7 + $0x8] sm:$0xff] %vm47, %v105
    // Predicated region
    $region22: #{tpu_custom_call.1} parent=1 // pred_check
      _
    $region23: #{tpu_custom_call.1} parent=1 // pred_check_branch
      %109 = sbr.rel (0) target = $region25
    $region24: #{tpu_custom_call.1} parent=1 // pred_region
      %111 = vsyncadd [#allocation4], 0
      %s112 = sshll.u32 [#allocation7], 4
      %s113 = int_to_ptr.vmem [resolvable:$true] %s112
      %s114 = sshll.u32 %s3, 4
      %s115 = int_to_ptr.hbm [resolvable:$true] %s114
      %120 = dma.vmem_to_hbm [thread:$0]  %s113, 256, %s115, [#allocation4], 128, 128, 8
    $region25: #{tpu_custom_call.1} parent=1 // pred_fallthru
      _
    // Predicated region
    $region26: #{tpu_custom_call.1} parent=1 // pred_check
      _
    $region27: #{tpu_custom_call.1} parent=1 // pred_check_branch
      %122 = sbr.rel (0) target = $region29
    $region28: #{tpu_custom_call.1} parent=1 // pred_region
      %124 = dma.done [#allocation4], 256
    $region29: #{tpu_custom_call.1} parent=1 // pred_fallthru
      _
    %125 = vsyncpa [#allocation3], 1
    %126 = vsyncpa [#allocation6], 1
    %127 = vsyncpa [#allocation4], 1

</llo_original>
